<compile_context>
chip_gen: v7x
topology: tpu7x:2x2x1
jax: 0.10.0
libtpu: 0.0.40
codegen_flags: <defaults>
</compile_context>

<pallas_src>
import math

import jax
import jax.numpy as jnp
from jax.experimental import pallas as pl
from jax.experimental.pallas import tpu as pltpu

_LANE = 128        # lane (last-dim) width: full vreg rows, unmasked stores
_SUBLANE = 8       # sublane granularity for f32 tiles
_LOG_CLAMP = -100.0  # PyTorch nn.BCELoss clamps log terms at -100


def _round_up(x, m):
    return ((x + m - 1) // m) * m


def _num_tensorcores():
    """Best-effort TensorCore count of the local chip (v7x: 2). Defaults to 1."""
    try:
        dev = jax.devices()[0]
        nc = getattr(dev, "num_cores", None)
        if nc:
            return int(nc)
        kind = str(getattr(dev, "device_kind", "")).lower()
        if "v7" in kind:
            return 2
    except Exception:
        pass
    return 1


def _bce_kernel(p_ref, y_ref, v_ref, o_ref):
    # One (tb, 128) lane-dense tile per grid step; pure VPU/EUP work, no MXU.
    p = p_ref[...].astype(jnp.float32)
    y = y_ref[...].astype(jnp.float32)
    v = v_ref[...].astype(jnp.float32)

    log_p = jnp.maximum(jnp.log(p), _LOG_CLAMP)        # clamp(-inf) -> -100
    log_1mp = jnp.maximum(jnp.log1p(-p), _LOG_CLAMP)   # log1p matches ATen

    # -(y*log_p + (1-y)*log_1mp), rewritten to save one multiply.
    loss = -(log_1mp + y * (log_p - log_1mp))
    # Keep a true multiply so non-binary `valid` weights keep exact semantics.
    o_ref[...] = (loss * v).astype(o_ref.dtype)


def _pick_tile(rows, max_rows_per_block, num_tc):
    """Row-tile size tb; grid = cdiv(rows, tb)."""
    max_rows_per_block = _round_up(max(max_rows_per_block, _SUBLANE), _SUBLANE)
    if rows <= max_rows_per_block:
        if num_tc >= 2 and rows > _SUBLANE:
            # Split a one-block problem into exactly num_tc blocks (v7x balance).
            return _round_up(pl.cdiv(rows, num_tc), _SUBLANE)
        # Single-TC chips: one full-extent block (allowed even if rows % 8 != 0).
        return rows
    tb = max_rows_per_block
    if num_tc >= 2:
        g = pl.cdiv(rows, tb)
        if g % num_tc != 0:
            # Round the grid-step count up to a multiple of the core count.
            g_bal = _round_up(g, num_tc)
            tb = _round_up(pl.cdiv(rows, g_bal), _SUBLANE)
    return tb


def bce_loss_pallas(prob_in, prob_gt, valid, *, out_dtype=None,
                    max_rows_per_block=2048):
    """Elementwise BCE(prob_in, prob_gt) * valid, same shape as the inputs."""
    shape = prob_in.shape
    assert prob_gt.shape == shape and valid.shape == shape
    if out_dtype is None:
        out_dtype = prob_in.dtype

    n = math.prod(shape)
    rows = pl.cdiv(n, _LANE)
    n2d = rows * _LANE
    ragged = n2d != n  # only then do we pad (and only the <128-elem tail)

    def to2d(x):
        x = jnp.ravel(x)  # free for contiguous arrays
        if ragged:
            # Zero-pad the tail: BCE(0, 0) * 0 == 0, no NaN; sliced away below.
            x = jnp.pad(x, (0, n2d - n))
        return x.reshape(rows, _LANE)

    p2d, y2d, v2d = to2d(prob_in), to2d(prob_gt), to2d(valid)

    tb = _pick_tile(rows, max_rows_per_block, _num_tensorcores())
    grid = pl.cdiv(rows, tb)  # partial last block is fine (masked writeback)

    blk = pl.BlockSpec((tb, _LANE), lambda i: (i, 0))
    out2d = pl.pallas_call(
        _bce_kernel,
        out_shape=jax.ShapeDtypeStruct((rows, _LANE), out_dtype),
        grid_spec=pltpu.PrefetchScalarGridSpec(
            num_scalar_prefetch=0,
            grid=(grid,),
            in_specs=[blk, blk, blk],
            out_specs=blk,
        ),
        compiler_params=pltpu.CompilerParams(
            dimension_semantics=("parallel",)),
    )(p2d, y2d, v2d)

    if ragged:
        return out2d.reshape(-1)[:n].reshape(shape)
    return out2d.reshape(shape)  # free: lane-aligned fast path, no copy


def bce_loss_ref(prob_in, prob_gt, valid):
    # Pure-JAX reference mirroring nn.BCELoss(reduction='none') * valid.
    p = prob_in.astype(jnp.float32)
    y = prob_gt.astype(jnp.float32)
    v = valid.astype(jnp.float32)
    log_p = jnp.maximum(jnp.log(p), _LOG_CLAMP)
    log_1mp = jnp.maximum(jnp.log1p(-p), _LOG_CLAMP)
    return (-(y * log_p + (1.0 - y) * log_1mp) * v).astype(prob_in.dtype)


if __name__ == "__main__":
    key = jax.random.PRNGKey(0)
    k1, k2, k3 = jax.random.split(key, 3)

    # Primary shape (lane-aligned fast path: no pad, no output slice).
    shape = (2, 4, 16, 16)  # batch=2, channels=4, spatial=16x16
    prob_in = jax.nn.sigmoid(jax.random.normal(k1, shape, dtype=jnp.float32))
    prob_gt = jax.random.uniform(k2, shape, dtype=jnp.float32)
    valid = (jax.random.uniform(k3, shape) > 0.2).astype(jnp.float32)

    out = bce_loss_pallas(prob_in, prob_gt, valid)
    jax.block_until_ready(out)
    ref = bce_loss_ref(prob_in, prob_gt, valid)
    assert out.shape == shape, (out.shape, shape)
    assert jnp.allclose(out, ref, atol=1e-5, rtol=1e-5)

    # Ragged shape (exercises the tail-padding path).
    shape_r = (3, 5, 7)
    pr = jax.nn.sigmoid(jax.random.normal(k1, shape_r, dtype=jnp.float32))
    yr = jax.random.uniform(k2, shape_r, dtype=jnp.float32)
    vr = (jax.random.uniform(k3, shape_r) > 0.2).astype(jnp.float32)
    out_r = bce_loss_pallas(pr, yr, vr)
    jax.block_until_ready(out_r)
    assert out_r.shape == shape_r
    assert jnp.allclose(out_r, bce_loss_ref(pr, yr, vr), atol=1e-5, rtol=1e-5)

    # Narrow-dtype streaming path (bf16 in / bf16 out), ~2.3x less HBM traffic.
    pb = prob_in.astype(jnp.bfloat16)
    yb = prob_gt.astype(jnp.bfloat16)
    vb = valid.astype(jnp.int8)
    out_b = bce_loss_pallas(pb, yb, vb, out_dtype=jnp.bfloat16)
    jax.block_until_ready(out_b)
    ref_b = bce_loss_ref(pb.astype(jnp.float32), yb.astype(jnp.float32),
                         vb.astype(jnp.float32)).astype(jnp.bfloat16)
    assert jnp.allclose(out_b.astype(jnp.float32), ref_b.astype(jnp.float32),
                        atol=1e-1, rtol=1e-1)

    print("KERNEL_OK")
</pallas_src>

<mosaic_0001>
module attributes {stable_mosaic.version = 11 : i64} {
  func.func @_bce_kernel(%arg0: i32, %arg1: memref<16x128xf32, #tpu.memory_space<vmem>>, %arg2: memref<16x128xf32, #tpu.memory_space<vmem>>, %arg3: memref<16x128xf32, #tpu.memory_space<vmem>>, %arg4: memref<16x128xf32, #tpu.memory_space<vmem>>) attributes {dimension_semantics = [#tpu.dimension_semantics<parallel>], iteration_bounds = array<i64: 1>, scalar_prefetch = 0 : i64, scratch_operands = 0 : i64, tpu.core_type = #tpu.core_type<tc>, window_params = [{transform_indices = @transform_0, window_bounds = array<i64: 16, 128>}, {transform_indices = @transform_1, window_bounds = array<i64: 16, 128>}, {transform_indices = @transform_2, window_bounds = array<i64: 16, 128>}, {transform_indices = @transform_3, window_bounds = array<i64: 16, 128>}]} {
    %c0 = arith.constant 0 : index
    %c0_0 = arith.constant 0 : index
    %0 = vector.load %arg1[%c0, %c0_0] : memref<16x128xf32, #tpu.memory_space<vmem>>, vector<16x128xf32>
    %c0_1 = arith.constant 0 : index
    %c0_2 = arith.constant 0 : index
    %1 = vector.load %arg2[%c0_1, %c0_2] : memref<16x128xf32, #tpu.memory_space<vmem>>, vector<16x128xf32>
    %c0_3 = arith.constant 0 : index
    %c0_4 = arith.constant 0 : index
    %2 = vector.load %arg3[%c0_3, %c0_4] : memref<16x128xf32, #tpu.memory_space<vmem>>, vector<16x128xf32>
    %3 = math.log %0 : vector<16x128xf32>
    %cst = arith.constant -1.000000e+02 : f32
    %4 = vector.broadcast %cst : f32 to vector<16x128xf32>
    %5 = arith.maximumf %3, %4 : vector<16x128xf32>
    %cst_5 = arith.constant 0.000000e+00 : f32
    %6 = vector.broadcast %cst_5 : f32 to vector<16x128xf32>
    %7 = arith.subf %6, %0 : vector<16x128xf32>
    %8 = math.log1p %7 : vector<16x128xf32>
    %cst_6 = arith.constant -1.000000e+02 : f32
    %9 = vector.broadcast %cst_6 : f32 to vector<16x128xf32>
    %10 = arith.maximumf %8, %9 : vector<16x128xf32>
    %11 = arith.subf %5, %10 : vector<16x128xf32>
    %12 = arith.mulf %1, %11 : vector<16x128xf32>
    %13 = arith.addf %10, %12 : vector<16x128xf32>
    %cst_7 = arith.constant 0.000000e+00 : f32
    %14 = vector.broadcast %cst_7 : f32 to vector<16x128xf32>
    %15 = arith.subf %14, %13 : vector<16x128xf32>
    %16 = arith.mulf %15, %2 : vector<16x128xf32>
    %c0_8 = arith.constant 0 : index
    %c0_9 = arith.constant 0 : index
    %17 = vector.load %arg4[%c0_8, %c0_9] : memref<16x128xf32, #tpu.memory_space<vmem>>, vector<16x128xf32>
    tpu.vector_store %arg4[%c0_8, %c0_9], %16 {strides = array<i32>} : memref<16x128xf32, #tpu.memory_space<vmem>>, vector<16x128xf32>,
    return
  }
  func.func @transform_0(%arg0: i32) -> (i32, i32) {
    %c0_i32 = arith.constant 0 : i32
    %c0_i32_0 = arith.constant 0 : i32
    return %arg0, %c0_i32 : i32, i32
  }
  func.func @transform_1(%arg0: i32) -> (i32, i32) {
    %c0_i32 = arith.constant 0 : i32
    %c0_i32_0 = arith.constant 0 : i32
    return %arg0, %c0_i32 : i32, i32
  }
  func.func @transform_2(%arg0: i32) -> (i32, i32) {
    %c0_i32 = arith.constant 0 : i32
    %c0_i32_0 = arith.constant 0 : i32
    return %arg0, %c0_i32 : i32, i32
  }
  func.func @transform_3(%arg0: i32) -> (i32, i32) {
    %c0_i32 = arith.constant 0 : i32
    %c0_i32_0 = arith.constant 0 : i32
    return %arg0, %c0_i32 : i32, i32
  }
}

</mosaic_0001>

<llo_original>
// kernel: tpu_custom_call.1
$region0: #{tpu_custom_call.1}
  #allocation0 [shape = 'u32[]', space=smem, size = 0x4, offset = 0x4, fixed_abs, tag = 'smem constant byte address 0x4 - core index']
  #allocation1 [shape = 'u32[144,128]{1,0:T(1,128)}', space=vmem, size = 0x12000, scoped, tag = 'internal scratch']
  %s0 = inlined_call_operand.hbm [shape: f32[16,128], index: 0, kind: input, shape index: {}]
  %s1 = inlined_call_operand.hbm [shape: f32[16,128], index: 1, kind: input, shape index: {}]
  %s2 = inlined_call_operand.hbm [shape: f32[16,128], index: 2, kind: input, shape index: {}]
  %s3 = inlined_call_operand.hbm [shape: f32[16,128], index: 3, kind: output, shape index: {}]
  %s4 = sld [smem:[#allocation0]]
  $region34: #{tpu_custom_call.1} parent=0
    _
  %s6 = ssub.s32 1, %s4
  %s7 = scalar_select 0, %s6, %s4
  $region1: #{tpu_custom_call.1} parent=0
    #allocation2 [shape = 'u8[8192]{0}', space=vmem, size = 0x2000, scoped, tag = 'input window, operand 0, single buffered']
    #allocation3 [shape = 's32[1]{0}', space=sflag, size = 0x4, scoped, tag = 'scoped memory for tpu_custom_call.1']
    #allocation4 [shape = 's32[1]{0}', space=sflag, size = 0x4, scoped, tag = 'scoped memory for tpu_custom_call.1']
    #allocation5 [shape = 'u8[8192]{0}', space=vmem, size = 0x2000, scoped, tag = 'input window, operand 1, single buffered']
    #allocation6 [shape = 's32[1]{0}', space=sflag, size = 0x4, scoped, tag = 'scoped memory for tpu_custom_call.1']
    #allocation7 [shape = 'u8[8192]{0}', space=vmem, size = 0x2000, scoped, tag = 'input window, operand 2, single buffered']
    #allocation8 [shape = 'u8[8192]{0}', space=vmem, size = 0x2000, scoped, tag = 'output window, operand 0, single buffered']
    %8 = vsyncpa [#allocation3], 0
    %9 = vsyncpa [#allocation6], 0
    %10 = vsyncpa [#allocation4], 0
    // Predicated region
    $region2: #{tpu_custom_call.1} parent=1 // pred_check
      _
    $region3: #{tpu_custom_call.1} parent=1 // pred_check_branch
      %12 = sbr.rel (0) target = $region5
    $region4: #{tpu_custom_call.1} parent=1 // pred_region
      %s14 = ssub.s32 256, 256
      %15 = vsyncadd [#allocation3], %s14
      %s16 = sshll.u32 [#allocation2], 4
      %s17 = int_to_ptr.vmem [resolvable:$true] %s16
      %22 = dma.hbm_to_vmem [thread:$0]  %s0, 256, %s17, [#allocation3], 128, 128, 8
    $region5: #{tpu_custom_call.1} parent=1 // pred_fallthru
      _
    // Predicated region
    $region6: #{tpu_custom_call.1} parent=1 // pred_check
      _
    $region7: #{tpu_custom_call.1} parent=1 // pred_check_branch
      %24 = sbr.rel (0) target = $region9
    $region8: #{tpu_custom_call.1} parent=1 // pred_region
      %s26 = ssub.s32 256, 256
      %27 = vsyncadd [#allocation6], %s26
      %s28 = sshll.u32 [#allocation5], 4
      %s29 = int_to_ptr.vmem [resolvable:$true] %s28
      %34 = dma.hbm_to_vmem [thread:$0]  %s1, 256, %s29, [#allocation6], 128, 128, 8
    $region9: #{tpu_custom_call.1} parent=1 // pred_fallthru
      _
    // Predicated region
    $region10: #{tpu_custom_call.1} parent=1 // pred_check
      _
    $region11: #{tpu_custom_call.1} parent=1 // pred_check_branch
      %36 = sbr.rel (0) target = $region13
    $region12: #{tpu_custom_call.1} parent=1 // pred_region
      %s38 = ssub.s32 256, 256
      %39 = vsyncadd [#allocation6], %s38
      %s40 = sshll.u32 [#allocation7], 4
      %s41 = int_to_ptr.vmem [resolvable:$true] %s40
      %46 = dma.hbm_to_vmem [thread:$0]  %s2, 256, %s41, [#allocation6], 128, 128, 8
    $region13: #{tpu_custom_call.1} parent=1 // pred_fallthru
      _
    // Predicated region
    $region14: #{tpu_custom_call.1} parent=1 // pred_check
      _
    $region15: #{tpu_custom_call.1} parent=1 // pred_check_branch
      %48 = sbr.rel (0) target = $region17
    $region16: #{tpu_custom_call.1} parent=1 // pred_region
      %49 = dma.done [#allocation3], 256
    $region17: #{tpu_custom_call.1} parent=1 // pred_fallthru
      _
    // Predicated region
    $region18: #{tpu_custom_call.1} parent=1 // pred_check
      _
    $region19: #{tpu_custom_call.1} parent=1 // pred_check_branch
      %51 = sbr.rel (0) target = $region21
    $region20: #{tpu_custom_call.1} parent=1 // pred_region
      %52 = dma.done [#allocation6], 256
    $region21: #{tpu_custom_call.1} parent=1 // pred_fallthru
      _
    // Predicated region
    $region22: #{tpu_custom_call.1} parent=1 // pred_check
      _
    $region23: #{tpu_custom_call.1} parent=1 // pred_check_branch
      %54 = sbr.rel (0) target = $region25
    $region24: #{tpu_custom_call.1} parent=1 // pred_region
      %55 = dma.done [#allocation6], 256
    $region25: #{tpu_custom_call.1} parent=1 // pred_fallthru
      _
    %v56 = vld [vmem:[#allocation2] sm:$0xff]
    %v57 = vld [vmem:[#allocation2 + $0x8] sm:$0xff]
    %v58 = vld [vmem:[#allocation5] sm:$0xff]
    %v59 = vld [vmem:[#allocation5 + $0x8] sm:$0xff]
    %v60 = vld [vmem:[#allocation7] sm:$0xff]
    %v61 = vld [vmem:[#allocation7 + $0x8] sm:$0xff]
    %v62 = vlog2.pop %v56
    %v63 = vmul.f32 %v62, 0.6931472
    %v64 = vlog2.pop %v57
    %v65 = vmul.f32 %v64, 0.6931472
    %v66 = vmax.f32 %v63, -100.0
    %v67 = vmax.f32 %v65, -100.0
    %v68 = vsub.f32 0.0, %v56
    %v69 = vsub.f32 0.0, %v57
    %v70 = vadd.f32 %v68, 1.0
    %v71 = vlog2.pop %v70
    %v72 = vmul.f32 %v71, 0.6931472
    %v73 = vmul.f32 -0.5, %v68
    %v74 = vadd.f32 %v73, 1.0
    %v75 = vmul.f32 %v74, %v68
    %v76 = vand.u32 2147483647, %v68
    %vm77 = vcmp.lt.f32.partialorder %v76, 0.0004427343
    %v78 = vsel %vm77, %v75, %v72
    %v79 = vadd.f32 %v69, 1.0
    %v80 = vlog2.pop %v79
    %v81 = vmul.f32 %v80, 0.6931472
    %v82 = vmul.f32 -0.5, %v69
    %v83 = vadd.f32 %v82, 1.0
    %v84 = vmul.f32 %v83, %v69
    %v85 = vand.u32 2147483647, %v69
    %vm86 = vcmp.lt.f32.partialorder %v85, 0.0004427343
    %v87 = vsel %vm86, %v84, %v81
    %v88 = vmax.f32 %v78, -100.0
    %v89 = vmax.f32 %v87, -100.0
    %v90 = vsub.f32 %v66, %v88
    %v91 = vsub.f32 %v67, %v89
    %v92 = vmul.f32 %v58, %v90
    %v93 = vmul.f32 %v59, %v91
    %v94 = vadd.f32 %v88, %v92
    %v95 = vadd.f32 %v89, %v93
    %v96 = vsub.f32 0.0, %v94
    %v97 = vsub.f32 0.0, %v95
    %v98 = vmul.f32 %v96, %v60
    %v99 = vmul.f32 %v97, %v61
    %100 = vst [vmem:[#allocation8] sm:$0xff] %v98
    %101 = vst [vmem:[#allocation8 + $0x8] sm:$0xff] %v99
    // Predicated region
    $region26: #{tpu_custom_call.1} parent=1 // pred_check
      _
    $region27: #{tpu_custom_call.1} parent=1 // pred_check_branch
      %103 = sbr.rel (0) target = $region29
    $region28: #{tpu_custom_call.1} parent=1 // pred_region
      %s105 = ssub.s32 256, 256
      %106 = vsyncadd [#allocation4], %s105
      %s107 = sshll.u32 [#allocation8], 4
      %s108 = int_to_ptr.vmem [resolvable:$true] %s107
      %113 = dma.vmem_to_hbm [thread:$0]  %s108, 256, %s3, [#allocation4], 128, 128, 8
    $region29: #{tpu_custom_call.1} parent=1 // pred_fallthru
      _
    // Predicated region
    $region30: #{tpu_custom_call.1} parent=1 // pred_check
      _
    $region31: #{tpu_custom_call.1} parent=1 // pred_check_branch
      %115 = sbr.rel (0) target = $region33
    $region32: #{tpu_custom_call.1} parent=1 // pred_region
      %116 = dma.done [#allocation4], 256
    $region33: #{tpu_custom_call.1} parent=1 // pred_fallthru
      _
    %117 = vsyncpa [#allocation3], 1
    %118 = vsyncpa [#allocation6], 1
    %119 = vsyncpa [#allocation4], 1

</llo_original>
